<compile_context>
chip_gen: v5e
topology: v5e:2x2
jax: 0.10.0
libtpu: 0.0.40
codegen_flags: <defaults>
</compile_context>

<pallas_src>
import math
from functools import partial

import jax
import jax.numpy as jnp
from jax import lax
from jax.experimental import pallas as pl
from jax.experimental.pallas import tpu as pltpu


def _round_up(x, m):
    return (x + m - 1) // m * m


# ---------------------------------------------------------------------------
# Kernel 1: row-tiled matmul + bias (used for `proj` and for GATConv's linear).
# ---------------------------------------------------------------------------
def _mm_bias_kernel(x_ref, w_ref, b_ref, o_ref):
    # x_ref: (TM, cin), w_ref: (cin, cout), b_ref: (1, cout) -> o_ref: (TM, cout)
    acc = jnp.dot(x_ref[...], w_ref[...], preferred_element_type=jnp.float32)
    o_ref[...] = (acc + b_ref[...].astype(jnp.float32)).astype(o_ref.dtype)


def linear_pallas(x2d, w, b=None, *, tm_max=512):
    """out[r, n] = sum_m x2d[r, m] * w[m, n] + b[n]."""
    rows, cin = x2d.shape
    cout = w.shape[1]
    b2d = (jnp.zeros((1, cout), jnp.float32) if b is None
           else b.reshape(1, cout).astype(jnp.float32))

    # Row tile: largest multiple of 8 up to tm_max; pad rows so the grid divides.
    tm = min(tm_max, _round_up(rows, 8))
    rows_p = _round_up(rows, tm)
    xp = x2d if rows_p == rows else jnp.pad(x2d, ((0, rows_p - rows), (0, 0)))

    out = pl.pallas_call(
        _mm_bias_kernel,
        out_shape=jax.ShapeDtypeStruct((rows_p, cout), x2d.dtype),
        grid=(rows_p // tm,),
        in_specs=[
            pl.BlockSpec((tm, cin), lambda i: (i, 0)),     # row tile of x (pipelined)
            pl.BlockSpec((cin, cout), lambda i: (0, 0)),   # W resident
            pl.BlockSpec((1, cout), lambda i: (0, 0)),     # bias resident
        ],
        out_specs=pl.BlockSpec((tm, cout), lambda i: (i, 0)),
        compiler_params=pltpu.CompilerParams(dimension_semantics=("parallel",)),
    )(xp, w, b2d)
    return out if rows_p == rows else out[:rows]


# ---------------------------------------------------------------------------
# Kernel 2: BatchNorm1d (training-mode forward: batch mean / biased variance).
# Whole-array block: the normalization is a reduction over ALL rows, and the
# node count here is tiny.  (A two-pass tiled reduction would be used for big N.)
# ---------------------------------------------------------------------------
def _batchnorm_kernel(x_ref, g_ref, b_ref, o_ref):
    x = x_ref[...].astype(jnp.float32)                       # (N, C)
    mean = jnp.mean(x, axis=0, keepdims=True)                # (1, C)
    xc = x - mean
    var = jnp.mean(xc * xc, axis=0, keepdims=True)           # biased, as PyTorch
    inv = lax.rsqrt(var + 1e-5)
    y = xc * inv * g_ref[...].astype(jnp.float32) + b_ref[...].astype(jnp.float32)
    o_ref[...] = y.astype(o_ref.dtype)


def batchnorm_pallas(x, gamma, beta):
    n, c = x.shape
    return pl.pallas_call(
        _batchnorm_kernel,
        out_shape=jax.ShapeDtypeStruct((n, c), x.dtype),
        grid=(1,),
        in_specs=[
            pl.BlockSpec((n, c), lambda i: (0, 0)),
            pl.BlockSpec((1, c), lambda i: (0, 0)),
            pl.BlockSpec((1, c), lambda i: (0, 0)),
        ],
        out_specs=pl.BlockSpec((n, c), lambda i: (0, 0)),
    )(x, gamma.reshape(1, c), beta.reshape(1, c))


# ---------------------------------------------------------------------------
# Kernel 3: GATConv attention + aggregation (dense adjacency-masked softmax).
#   xsrc_ref : (N_p, H*C)  transformed features of ALL source nodes (resident)
#   xdst_ref : (TN,  H*C)  transformed features of this target-row tile
#   asrc_ref : (1, H*C)    per-head attention vector (source side)
#   adst_ref : (1, H*C)    per-head attention vector (target side)
#   adj_ref  : (TN, N_p)   adj[i, j] = 1 iff edge j -> i (self-loops included)
#   bias_ref : (1, H*C)
#   o_ref    : (TN, H*C)
# ---------------------------------------------------------------------------
def _gat_attn_kernel(xsrc_ref, xdst_ref, asrc_ref, adst_ref, adj_ref, bias_ref,
                     o_ref, *, heads, head_dim):
    xs = xsrc_ref[...].astype(jnp.float32)
    xd = xdst_ref[...].astype(jnp.float32)
    aw_s = asrc_ref[...].astype(jnp.float32)
    aw_d = adst_ref[...].astype(jnp.float32)
    adj = adj_ref[...].astype(jnp.float32)

    for h in range(heads):                                   # static, small unroll
        sl = slice(h * head_dim, (h + 1) * head_dim)
        xs_h = xs[:, sl]                                     # (N_p, C)  sources
        xd_h = xd[:, sl]                                     # (TN,  C)  targets

        # a_dst[i] = <W x_i, att_dst_h>  (column);  a_src[j] = <W x_j, att_src_h> (row).
        a_dst = jnp.sum(xd_h * aw_d[:, sl], axis=-1, keepdims=True)        # (TN, 1)
        a_src = lax.dot_general(aw_s[:, sl], xs_h,
                                (((1,), (1,)), ((), ())),
                                preferred_element_type=jnp.float32)        # (1, N_p)

        e = a_dst + a_src                                    # (TN, N_p) outer sum
        e = jnp.where(e >= 0, e, 0.2 * e)                    # LeakyReLU(0.2)
        e = jnp.where(adj > 0, e, -1e30)                     # mask non-edges
        m = jnp.max(e, axis=-1, keepdims=True)
        p = jnp.exp(e - m) * adj                             # exact zeros off-graph
        attn = p / jnp.sum(p, axis=-1, keepdims=True)        # softmax over sources

        out_h = jnp.dot(attn, xs_h, preferred_element_type=jnp.float32)    # (TN, C)
        o_ref[:, sl] = (out_h + bias_ref[:, sl].astype(jnp.float32)).astype(o_ref.dtype)


def gat_attention(xt, att_src, att_dst, adj, bias, heads, head_dim, *, tn_max=128):
    n, hc = xt.shape
    tn = min(tn_max, _round_up(n, 8))
    n_p = _round_up(n, tn)
    if n_p != n:
        xt = jnp.pad(xt, ((0, n_p - n), (0, 0)))
        adj = jnp.pad(adj, ((0, n_p - n), (0, n_p - n)))
        # give padded target rows a self-loop so their softmax stays finite
        pad_diag = (jnp.arange(n_p) >= n).astype(adj.dtype)
        adj = jnp.maximum(adj, jnp.diag(pad_diag))

    kernel = partial(_gat_attn_kernel, heads=heads, head_dim=head_dim)
    out = pl.pallas_call(
        kernel,
        out_shape=jax.ShapeDtypeStruct((n_p, hc), xt.dtype),
        grid=(n_p // tn,),
        in_specs=[
            pl.BlockSpec((n_p, hc), lambda i: (0, 0)),   # all sources, resident
            pl.BlockSpec((tn, hc), lambda i: (i, 0)),    # target tile
            pl.BlockSpec((1, hc), lambda i: (0, 0)),     # att_src
            pl.BlockSpec((1, hc), lambda i: (0, 0)),     # att_dst
            pl.BlockSpec((tn, n_p), lambda i: (i, 0)),   # adjacency rows of tile
            pl.BlockSpec((1, hc), lambda i: (0, 0)),     # bias
        ],
        out_specs=pl.BlockSpec((tn, hc), lambda i: (i, 0)),
        compiler_params=pltpu.CompilerParams(dimension_semantics=("parallel",)),
    )(xt, xt, att_src, att_dst, adj, bias)
    return out[:n]


# ---------------------------------------------------------------------------
# Module wrapper (forward only) + pure-JAX reference.
# ---------------------------------------------------------------------------
def build_adj(edge_index, n):
    """adj[i, j] = 1 iff edge j -> i; exactly one self-loop per node (PyG default)."""
    src, dst = edge_index[0], edge_index[1]
    adj = jnp.zeros((n, n), jnp.float32).at[dst, src].set(1.0)
    return jnp.maximum(adj, jnp.eye(n, dtype=jnp.float32))


class GATPallas:
    """JAX/Pallas port of DBLP/gnn.py::GAT (forward only, dropout = 0)."""

    def __init__(self, input_dim, hidden_dim, output_dim, n_layer, n_heads,
                 dropout=0.0, key=jax.random.PRNGKey(0)):
        assert output_dim % n_heads == 0
        self.n_layer = n_layer
        self.n_heads = n_heads
        self.head_dim = output_dim // n_heads
        self.dropout = dropout   # p=0 in the spec call -> identity
        hc = n_heads * self.head_dim

        keys = jax.random.split(key, 4 + 4 * n_layer)
        self.proj_w = jax.random.normal(keys[0], (input_dim, hidden_dim),
                                        jnp.float32) / math.sqrt(input_dim)
        self.proj_b = 0.1 * jax.random.normal(keys[1], (hidden_dim,), jnp.float32)
        self.bn_gamma = 1.0 + 0.1 * jax.random.normal(keys[2], (hidden_dim,), jnp.float32)
        self.bn_beta = 0.1 * jax.random.normal(keys[3], (hidden_dim,), jnp.float32)

        self.layers = []
        for i in range(n_layer):
            in_dim = hidden_dim if i == 0 else output_dim
            k1, k2, k3, k4 = keys[4 + 4 * i: 8 + 4 * i]
            self.layers.append(dict(
                lin_w=jax.random.normal(k1, (in_dim, hc), jnp.float32) / math.sqrt(in_dim),
                att_src=jax.random.normal(k2, (1, hc), jnp.float32) / math.sqrt(self.head_dim),
                att_dst=jax.random.normal(k3, (1, hc), jnp.float32) / math.sqrt(self.head_dim),
                bias=0.1 * jax.random.normal(k4, (1, hc), jnp.float32),
            ))

    def __call__(self, x, edge_index, idx):
        n = x.shape[0]
        adj = build_adj(edge_index, n)

        h = linear_pallas(x, self.proj_w, self.proj_b)           # proj
        h = batchnorm_pallas(h, self.bn_gamma, self.bn_beta)     # norm

        for layer in self.layers:                                # GATConv stack
            xt = linear_pallas(h, layer['lin_w'])                # W x (bias=False)
            h = gat_attention(xt, layer['att_src'], layer['att_dst'], adj,
                              layer['bias'], self.n_heads, self.head_dim)
        return h[idx]


def gat_reference(model, x, edge_index, idx):
    n = x.shape[0]
    adj = build_adj(edge_index, n)
    h = x @ model.proj_w + model.proj_b[None, :]
    mean = jnp.mean(h, axis=0, keepdims=True)
    var = jnp.mean((h - mean) ** 2, axis=0, keepdims=True)
    h = (h - mean) * lax.rsqrt(var + 1e-5) * model.bn_gamma[None, :] + model.bn_beta[None, :]

    H, C = model.n_heads, model.head_dim
    for layer in model.layers:
        xt = h @ layer['lin_w']
        xt_h = xt.reshape(n, H, C)
        a_src = jnp.sum(xt_h * layer['att_src'].reshape(1, H, C), axis=-1)   # (n, H)
        a_dst = jnp.sum(xt_h * layer['att_dst'].reshape(1, H, C), axis=-1)   # (n, H)
        e = a_dst[:, None, :] + a_src[None, :, :]                            # (tgt, src, H)
        e = jnp.where(e >= 0, e, 0.2 * e)
        e = jnp.where(adj[:, :, None] > 0, e, -1e30)
        m = jnp.max(e, axis=1, keepdims=True)
        p = jnp.exp(e - m) * adj[:, :, None]
        w = p / jnp.sum(p, axis=1, keepdims=True)
        out = jnp.einsum('ijh,jhc->ihc', w, xt_h)
        h = out.reshape(n, H * C) + layer['bias']
    return h[idx]


if __name__ == "__main__":
    key = jax.random.PRNGKey(0)
    k_model, k_x = jax.random.split(key)

    N, INPUT_DIM, HIDDEN_DIM, OUTPUT_DIM, N_LAYER, N_HEADS = 16, 16, 32, 32, 2, 4

    model = GATPallas(INPUT_DIM, HIDDEN_DIM, OUTPUT_DIM, N_LAYER, N_HEADS,
                      dropout=0.0, key=k_model)

    x = jax.random.normal(k_x, (N, INPUT_DIM), jnp.float32)
    src = jnp.arange(N, dtype=jnp.int32)
    dst = (src + 1) % N
    edge_index = jnp.stack([jnp.concatenate([src, dst]),       # bidirectional ring
                            jnp.concatenate([dst, src])])
    idx = jnp.array([0, 3, 7, 12], dtype=jnp.int32)

    y = jax.block_until_ready(model(x, edge_index, idx))
    ref = gat_reference(model, x, edge_index, idx)

    assert y.shape == (idx.shape[0], OUTPUT_DIM)
    assert jnp.allclose(y, ref, atol=1e-3, rtol=1e-3), \
        f"max abs err = {float(jnp.max(jnp.abs(y - ref)))}"
    print("KERNEL_OK")
</pallas_src>

<mosaic_0001>
module attributes {stable_mosaic.version = 11 : i64} {
  func.func @_mm_bias_kernel(%arg0: i32, %arg1: memref<16x16xf32, #tpu.memory_space<vmem>>, %arg2: memref<16x32xf32, #tpu.memory_space<vmem>>, %arg3: memref<1x32xf32, #tpu.memory_space<vmem>>, %arg4: memref<16x32xf32, #tpu.memory_space<vmem>>) attributes {dimension_semantics = [#tpu.dimension_semantics<parallel>], iteration_bounds = array<i64: 1>, scalar_prefetch = 0 : i64, scratch_operands = 0 : i64, tpu.core_type = #tpu.core_type<tc>, window_params = [{transform_indices = @transform_0, window_bounds = array<i64: 16, 16>}, {pipeline_mode = #tpu.pipeline_mode<synchronous>, transform_indices = @transform_1, window_bounds = array<i64: 16, 32>}, {pipeline_mode = #tpu.pipeline_mode<synchronous>, transform_indices = @transform_2, window_bounds = array<i64: 1, 32>}, {transform_indices = @transform_3, window_bounds = array<i64: 16, 32>}]} {
    %c0 = arith.constant 0 : index
    %c0_0 = arith.constant 0 : index
    %0 = vector.load %arg1[%c0, %c0_0] : memref<16x16xf32, #tpu.memory_space<vmem>>, vector<16x16xf32>
    %c0_1 = arith.constant 0 : index
    %c0_2 = arith.constant 0 : index
    %1 = vector.load %arg2[%c0_1, %c0_2] : memref<16x32xf32, #tpu.memory_space<vmem>>, vector<16x32xf32>
    %cst = arith.constant dense<0.000000e+00> : vector<16x32xf32>
    %2 = tpu.matmul %0, %1, %cst {dimension_numbers = #tpu.dot_dimension_numbers<[1], [0], [0], [1], [0, 0, 1, 1], [], []>} : vector<16x16xf32>, vector<16x32xf32>, vector<16x32xf32> -> vector<16x32xf32>
    %c0_3 = arith.constant 0 : index
    %c0_4 = arith.constant 0 : index
    %3 = vector.load %arg3[%c0_3, %c0_4] : memref<1x32xf32, #tpu.memory_space<vmem>>, vector<1x32xf32>
    %4 = vector.broadcast %3 : vector<1x32xf32> to vector<16x32xf32>
    %5 = arith.addf %2, %4 : vector<16x32xf32>
    %c0_5 = arith.constant 0 : index
    %c0_6 = arith.constant 0 : index
    %6 = vector.load %arg4[%c0_5, %c0_6] : memref<16x32xf32, #tpu.memory_space<vmem>>, vector<16x32xf32>
    tpu.vector_store %arg4[%c0_5, %c0_6], %5 {strides = array<i32>} : memref<16x32xf32, #tpu.memory_space<vmem>>, vector<16x32xf32>,
    return
  }
  func.func @transform_0(%arg0: i32) -> (i32, i32) {
    %c0_i32 = arith.constant 0 : i32
    %c0_i32_0 = arith.constant 0 : i32
    return %arg0, %c0_i32 : i32, i32
  }
  func.func @transform_1(%arg0: i32) -> (i32, i32) {
    %c0_i32 = arith.constant 0 : i32
    %c0_i32_0 = arith.constant 0 : i32
    %c0_i32_1 = arith.constant 0 : i32
    return %c0_i32, %c0_i32_0 : i32, i32
  }
  func.func @transform_2(%arg0: i32) -> (i32, i32) {
    %c0_i32 = arith.constant 0 : i32
    %c0_i32_0 = arith.constant 0 : i32
    %c0_i32_1 = arith.constant 0 : i32
    return %c0_i32, %c0_i32_0 : i32, i32
  }
  func.func @transform_3(%arg0: i32) -> (i32, i32) {
    %c0_i32 = arith.constant 0 : i32
    %c0_i32_0 = arith.constant 0 : i32
    return %arg0, %c0_i32 : i32, i32
  }
}

</mosaic_0001>

<llo_original>
// kernel: tpu_custom_call.1
$region0: #{tpu_custom_call.1}
  #allocation0 [shape = 'u32[]', space=smem, size = 0x4, offset = 0x4, fixed_abs, tag = 'smem constant byte address 0x4 - core index']
  #allocation1 [shape = 'u32[72,128]{1,0:T(1,128)}', space=vmem, size = 0x9000, scoped, tag = 'internal scratch']
  %s0 = inlined_call_operand.hbm [shape: f32[16,16], index: 0, kind: input, shape index: {}]
  %s1 = inlined_call_operand.hbm [shape: f32[16,32], index: 1, kind: input, shape index: {}]
  %s2 = inlined_call_operand.vmem [shape: f32[1,32], index: 2, kind: input, shape index: {}]
  %s3 = inlined_call_operand.hbm [shape: f32[16,32], index: 3, kind: output, shape index: {}]
  %s4 = sld [smem:[#allocation0]]
  $region30: #{tpu_custom_call.1} parent=0
    _
  %s6 = ssub.s32 1, %s4
  %s7 = scalar_select 0, %s6, %s4
  $region1: #{tpu_custom_call.1} parent=0
    #allocation2 [shape = 'u8[8192]{0}', space=vmem, size = 0x2000, scoped, tag = 'input window, operand 0, single buffered']
    #allocation3 [shape = 's32[1]{0}', space=sflag, size = 0x4, scoped, tag = 'scoped memory for tpu_custom_call.1']
    #allocation4 [shape = 's32[1]{0}', space=sflag, size = 0x4, scoped, tag = 'scoped memory for tpu_custom_call.1']
    #allocation5 [shape = 'u8[8192]{0}', space=vmem, size = 0x2000, scoped, tag = 'input window, operand 1, single buffered']
    #allocation6 [shape = 's32[1]{0}', space=sflag, size = 0x4, scoped, tag = 'scoped memory for tpu_custom_call.1']
    #allocation7 [shape = 'u8[8192]{0}', space=vmem, size = 0x2000, scoped, tag = 'output window, operand 0, single buffered']
    %8 = vsyncpa [#allocation3], 0
    %9 = vsyncpa [#allocation6], 0
    %10 = vsyncpa [#allocation4], 0
    // Predicated region
    $region2: #{tpu_custom_call.1} parent=1 // pred_check
      _
    $region3: #{tpu_custom_call.1} parent=1 // pred_check_branch
      %12 = sbr.rel (0) target = $region5
    $region4: #{tpu_custom_call.1} parent=1 // pred_region
      %14 = vsyncadd [#allocation3], 0
      %s15 = sshll.u32 %s0, 4
      %s16 = int_to_ptr.hbm [resolvable:$true] %s15
      %s17 = sshll.u32 [#allocation2], 4
      %s18 = int_to_ptr.vmem [resolvable:$true] %s17
      %23 = dma.hbm_to_vmem [thread:$0]  %s16, 256, %s18, [#allocation3], 128, 128, 8
    $region5: #{tpu_custom_call.1} parent=1 // pred_fallthru
      _
    // Predicated region
    $region6: #{tpu_custom_call.1} parent=1 // pred_check
      _
    $region7: #{tpu_custom_call.1} parent=1 // pred_check_branch
      %25 = sbr.rel (0) target = $region9
    $region8: #{tpu_custom_call.1} parent=1 // pred_region
      %27 = vsyncadd [#allocation6], 0
      %s28 = sshll.u32 %s1, 4
      %s29 = int_to_ptr.hbm [resolvable:$true] %s28
      %s30 = sshll.u32 [#allocation5], 4
      %s31 = int_to_ptr.vmem [resolvable:$true] %s30
      %36 = dma.hbm_to_vmem [thread:$0]  %s29, 256, %s31, [#allocation6], 128, 128, 8
    $region9: #{tpu_custom_call.1} parent=1 // pred_fallthru
      _
    // Predicated region
    $region10: #{tpu_custom_call.1} parent=1 // pred_check
      _
    $region11: #{tpu_custom_call.1} parent=1 // pred_check_branch
      %38 = sbr.rel (0) target = $region13
    $region12: #{tpu_custom_call.1} parent=1 // pred_region
      _
    $region13: #{tpu_custom_call.1} parent=1 // pred_fallthru
      _
    // Predicated region
    $region14: #{tpu_custom_call.1} parent=1 // pred_check
      _
    $region15: #{tpu_custom_call.1} parent=1 // pred_check_branch
      %40 = sbr.rel (0) target = $region17
    $region16: #{tpu_custom_call.1} parent=1 // pred_region
      %42 = dma.done [#allocation3], 256
    $region17: #{tpu_custom_call.1} parent=1 // pred_fallthru
      _
    // Predicated region
    $region18: #{tpu_custom_call.1} parent=1 // pred_check
      _
    $region19: #{tpu_custom_call.1} parent=1 // pred_check_branch
      %44 = sbr.rel (0) target = $region21
    $region20: #{tpu_custom_call.1} parent=1 // pred_region
      %46 = dma.done [#allocation6], 256
    $region21: #{tpu_custom_call.1} parent=1 // pred_fallthru
      _
    %v47 = vld [vmem:[#allocation2] sm:$0xff]
    %v48 = vld [vmem:[#allocation2 + $0x8] sm:$0xff]
    %v49 = vld [vmem:[#allocation5] sm:$0xff]
    %v50 = vld [vmem:[#allocation5 + $0x8] sm:$0xff]
    %v51 = vld [vmem:[%s2] sm:$0x1]
    %v53 = vperm.slane %v51, 0
    %vm55 = vcmask 130048
    %v57 = vsel %vm55, %v47, 0
    %v60 = vsel %vm55, %v48, 0
    %62 = vmatpush.msra.mxu0 0.0
    %63 = vmatpush.msra.mxu0 0.0
    %64 = vmatpush.msra.mxu0 0.0
    %65 = vmatpush.msra.mxu0 0.0
    %66 = vmatpush.msra.mxu0 0.0
    %67 = vmatpush.msra.mxu0 0.0
    %68 = vmatpush.msra.mxu0 0.0
    %69 = vmatpush.msra.mxu0 0.0
    %70 = vmatpush.msra.mxu0 0.0
    %71 = vmatpush.msra.mxu0 0.0
    %72 = vmatpush.msra.mxu0 0.0
    %73 = vmatpush.msra.mxu0 0.0
    %74 = vmatpush.msra.mxu0 0.0
    %75 = vmatpush.msra.mxu0 0.0
    %76 = vmatpush.msra.mxu0 %v50
    %77 = vmatpush.msra.mxu0 %v49
    %78 = vmatmul.f32.gmra.mxu0 %v57
    %v79 = vpop.f32.mrf.mxu0
    %v80 = vadd.f32 %v53, %v79
    %81 = vmatmul.f32.gmra.mxu0 %v60
    %v82 = vpop.f32.mrf.mxu0
    %v83 = vadd.f32 %v53, %v82
    %84 = vdwg.mxu0
    %vm85 = vcmask 261120
    %86 = vst.msk [vmem:[#allocation7] sm:$0xff] %vm85, %v80
    %87 = vst.msk [vmem:[#allocation7 + $0x8] sm:$0xff] %vm85, %v83
    // Predicated region
    $region22: #{tpu_custom_call.1} parent=1 // pred_check
      _
    $region23: #{tpu_custom_call.1} parent=1 // pred_check_branch
      %89 = sbr.rel (0) target = $region25
    $region24: #{tpu_custom_call.1} parent=1 // pred_region
      %91 = vsyncadd [#allocation4], 0
      %s92 = sshll.u32 [#allocation7], 4
      %s93 = int_to_ptr.vmem [resolvable:$true] %s92
      %s94 = sshll.u32 %s3, 4
      %s95 = int_to_ptr.hbm [resolvable:$true] %s94
      %100 = dma.vmem_to_hbm [thread:$0]  %s93, 256, %s95, [#allocation4], 128, 128, 8
    $region25: #{tpu_custom_call.1} parent=1 // pred_fallthru
      _
    // Predicated region
    $region26: #{tpu_custom_call.1} parent=1 // pred_check
      _
    $region27: #{tpu_custom_call.1} parent=1 // pred_check_branch
      %102 = sbr.rel (0) target = $region29
    $region28: #{tpu_custom_call.1} parent=1 // pred_region
      %104 = dma.done [#allocation4], 256
    $region29: #{tpu_custom_call.1} parent=1 // pred_fallthru
      _
    %105 = vsyncpa [#allocation3], 1
    %106 = vsyncpa [#allocation6], 1
    %107 = vsyncpa [#allocation4], 1

</llo_original>
